<compile_context>
chip_gen: v6e
topology: v6e:2x2x1
jax: 0.10.0
libtpu: 0.0.40
codegen_flags: <defaults>
</compile_context>

<pallas_src>
import functools

import jax
import jax.numpy as jnp
from jax.experimental import pallas as pl
from jax.experimental.pallas import tpu as pltpu

# ----------------------------- model hyper-params -----------------------------
CONCATS = 3
IN_DIM = 16
HIDDEN_DIMS = [32, 64]   # hidden_dims[0] = per-branch linear embedding dim
OUT_DIM = 4
BATCH = 8
BN_EPS = 1e-5

LANE = 128               # TPU lane width; output linear is padded to this
TB_CAP = 2048            # max batch-tile rows (multiple of 8; ~3 MiB VMEM worst case)


# --------------------------------- kernel -------------------------------------
def xmlp_kernel(x_ref, w1_ref, b1_ref, w2_ref, b2_ref, o_ref):
    """Fused XMLP forward for one batch tile.

    x_ref  : (TB, concats*in_dim)   lane-dense 2D activation tile
    w1_ref : (concats*in_dim, h1)   branch linears + MLP hidden linear + BN, folded
    b1_ref : (1, h1)
    w2_ref : (h1, LANE)             final plain linear, zero-padded to 128 columns
    b2_ref : (1, LANE)
    o_ref  : (TB, LANE)             lane-dense output tile (cols >= out_dim are zero)
    """
    z = jnp.dot(x_ref[...], w1_ref[...],
                preferred_element_type=jnp.float32) + b1_ref[...]
    z = jnp.maximum(z, 0.0)                                   # ReLU (dropout=0.0 -> no-op)
    out = jnp.dot(z, w2_ref[...],
                  preferred_element_type=jnp.float32) + b2_ref[...]
    o_ref[...] = out.astype(o_ref.dtype)


# ------------------------- one-time constant folding ---------------------------
def fold_params(params, *, concats, in_dim):
    """Load-time fold: BN(eval) + per-concat branch linears -> combined first linear.

    Returns (wcomb, bcomb, w2p, b2p) ready to feed the kernel; call ONCE, outside
    the per-forward jitted path.
    """
    (wlin, blin, w1, b1, bn_g, bn_b, bn_m, bn_v, w2, b2) = params
    h0 = wlin.shape[-1]
    h1 = w1.shape[-1]
    out_dim = w2.shape[-1]

    # 1) BatchNorm1d (eval) folded into the first MLP linear (f32, lossless).
    s = bn_g * jax.lax.rsqrt(bn_v + BN_EPS)                    # (1, h1)
    w1f = w1 * s                                               # (concats*h0, h1)
    b1f = (b1 - bn_m) * s + bn_b                               # (1, h1)
    # 2) Per-concat branch linears folded into that same first linear.
    w1f_r = w1f.reshape(concats, h0, h1)                       # (c, h0, h1)
    wcomb = jnp.einsum("cih,cho->cio", wlin, w1f_r,
                       preferred_element_type=jnp.float32)     # (c, in_dim, h1)
    wcomb = wcomb.reshape(concats * in_dim, h1)                # (c*in_dim, h1)
    bcomb = jnp.einsum("ch,cho->o", blin, w1f_r,
                       preferred_element_type=jnp.float32)[None, :] + b1f   # (1, h1)
    # 3) Zero-pad final linear to a full lane width -> unmasked, lane-dense stores.
    w2p = jnp.zeros((h1, LANE), jnp.float32).at[:, :out_dim].set(w2)
    b2p = jnp.zeros((1, LANE), jnp.float32).at[:, :out_dim].set(b2)
    return wcomb, bcomb, w2p, b2p


def _num_tensorcores():
    """2 for megacore-style chips (v7x / v4 / v5p), else 1. Heuristic, perf-only."""
    try:
        kind = jax.devices()[0].device_kind.lower()
    except Exception:
        return 1
    return 2 if any(tag in kind for tag in ("v7", "v4", "v5p")) else 1


# -------------------------------- wrapper --------------------------------------
@functools.partial(jax.jit, static_argnames=("out_dim",))
def xmlp_forward(x_flat, wcomb, bcomb, w2p, b2p, *, out_dim):
    """x_flat: (B, concats*in_dim) float32 -> (B, out_dim) float32."""
    B, feat = x_flat.shape
    h1 = wcomb.shape[-1]

    # ---- batch-tile selection (trace-time Python; all shapes static) ----
    num_tc = _num_tensorcores()
    b8 = 8 * pl.cdiv(B, 8)                       # sublane-aligned batch
    if num_tc > 1:
        tb = 8 * pl.cdiv(b8, 8 * num_tc)         # ensure >= num_tc grid steps
    else:
        tb = b8                                  # single core: one maximal tile
    tb = max(8, min(TB_CAP, tb))
    bp = tb * pl.cdiv(B, tb)                     # pad to whole tiles: no ragged tail
    if bp != B:
        x_flat = jnp.pad(x_flat, ((0, bp - B), (0, 0)))
    grid = (bp // tb,)

    full = lambda a: pl.BlockSpec(a.shape, lambda i: (0,) * a.ndim)

    flops = 2 * bp * feat * h1 + 2 * bp * h1 * LANE
    bytes_accessed = 4 * (bp * feat + feat * h1 + h1 + h1 * LANE + LANE + bp * LANE)
    cost = pl.CostEstimate(flops=flops, transcendentals=0,
                           bytes_accessed=bytes_accessed)

    out = pl.pallas_call(
        xmlp_kernel,
        out_shape=jax.ShapeDtypeStruct((bp, LANE), jnp.float32),
        grid=grid,
        in_specs=[
            pl.BlockSpec((tb, feat), lambda i: (i, 0)),        # x (lane-dense 2D)
            full(wcomb), full(bcomb),                          # folded first linear
            full(w2p), full(b2p),                              # padded output linear
        ],
        out_specs=pl.BlockSpec((tb, LANE), lambda i: (i, 0)),
        compiler_params=pltpu.CompilerParams(dimension_semantics=("parallel",)),
        cost_estimate=cost,
    )(x_flat, wcomb, bcomb, w2p, b2p)
    return out[:B, :out_dim]


# ------------------------- deterministic param init ----------------------------
def init_params(key, concats, in_dim, hidden_dims, out_dim):
    h0, h1 = hidden_dims[0], hidden_dims[1]
    ks = jax.random.split(key, 6)
    wlin = jax.random.normal(ks[0], (concats, in_dim, h0), jnp.float32) * 0.05
    blin = jax.random.normal(ks[1], (concats, h0), jnp.float32) * 0.05
    w1 = jax.random.normal(ks[2], (concats * h0, h1), jnp.float32) * 0.05
    b1 = jax.random.normal(ks[3], (1, h1), jnp.float32) * 0.05
    # BatchNorm1d defaults (inference mode).
    bn_g = jnp.ones((1, h1), jnp.float32)
    bn_b = jnp.zeros((1, h1), jnp.float32)
    bn_m = jnp.zeros((1, h1), jnp.float32)
    bn_v = jnp.ones((1, h1), jnp.float32)
    w2 = jax.random.normal(ks[4], (h1, out_dim), jnp.float32) * 0.05
    b2 = jax.random.normal(ks[5], (1, out_dim), jnp.float32) * 0.05
    return (wlin, blin, w1, b1, bn_g, bn_b, bn_m, bn_v, w2, b2)


def xmlp_reference(x_flat, params, *, concats, in_dim):
    """Pure-JAX reference (unfolded) mirroring the PyTorch forward pass."""
    (wlin, blin, w1, b1, bn_g, bn_b, bn_m, bn_v, w2, b2) = params
    x = x_flat.reshape(-1, concats, in_dim).transpose(1, 0, 2)          # (concats, B, in_dim)
    h = jnp.concatenate(
        [x[c] @ wlin[c] + blin[c] for c in range(concats)], axis=1)     # (B, concats*h0)
    z = h @ w1 + b1
    z = (z - bn_m) / jnp.sqrt(bn_v + BN_EPS) * bn_g + bn_b
    z = jnp.maximum(z, 0.0)
    return z @ w2 + b2


# ----------------------------------- main ---------------------------------------
if __name__ == "__main__":
    key = jax.random.PRNGKey(0)
    kx, kp = jax.random.split(key)

    x = jax.random.normal(kx, (BATCH, CONCATS * IN_DIM), jnp.float32)
    params = init_params(kp, CONCATS, IN_DIM, HIDDEN_DIMS, OUT_DIM)

    # One-time weight folding (kept out of the per-call jitted forward).
    folded = fold_params(params, concats=CONCATS, in_dim=IN_DIM)
    folded = jax.block_until_ready(folded)

    out = xmlp_forward(x, *folded, out_dim=OUT_DIM)
    out = jax.block_until_ready(out)

    ref = xmlp_reference(x, params, concats=CONCATS, in_dim=IN_DIM)
    assert out.shape == (BATCH, OUT_DIM)
    assert jnp.allclose(out, ref, atol=1e-4, rtol=1e-4), "mismatch vs reference"

    print("KERNEL_OK")
</pallas_src>

<mosaic_0001>
module attributes {stable_mosaic.version = 11 : i64} {
  func.func @xmlp_kernel(%arg0: i32, %arg1: memref<8x48xf32, #tpu.memory_space<vmem>>, %arg2: memref<48x64xf32, #tpu.memory_space<vmem>>, %arg3: memref<1x64xf32, #tpu.memory_space<vmem>>, %arg4: memref<64x128xf32, #tpu.memory_space<vmem>>, %arg5: memref<1x128xf32, #tpu.memory_space<vmem>>, %arg6: memref<8x128xf32, #tpu.memory_space<vmem>>) attributes {dimension_semantics = [#tpu.dimension_semantics<parallel>], iteration_bounds = array<i64: 1>, scalar_prefetch = 0 : i64, scratch_operands = 0 : i64, tpu.core_type = #tpu.core_type<tc>, window_params = [{transform_indices = @transform_0, window_bounds = array<i64: 8, 48>}, {pipeline_mode = #tpu.pipeline_mode<synchronous>, transform_indices = @transform_1, window_bounds = array<i64: 48, 64>}, {pipeline_mode = #tpu.pipeline_mode<synchronous>, transform_indices = @transform_2, window_bounds = array<i64: 1, 64>}, {pipeline_mode = #tpu.pipeline_mode<synchronous>, transform_indices = @transform_3, window_bounds = array<i64: 64, 128>}, {pipeline_mode = #tpu.pipeline_mode<synchronous>, transform_indices = @transform_4, window_bounds = array<i64: 1, 128>}, {transform_indices = @transform_5, window_bounds = array<i64: 8, 128>}]} {
    %c0 = arith.constant 0 : index
    %c0_0 = arith.constant 0 : index
    %0 = vector.load %arg1[%c0, %c0_0] : memref<8x48xf32, #tpu.memory_space<vmem>>, vector<8x48xf32>
    %c0_1 = arith.constant 0 : index
    %c0_2 = arith.constant 0 : index
    %1 = vector.load %arg2[%c0_1, %c0_2] : memref<48x64xf32, #tpu.memory_space<vmem>>, vector<48x64xf32>
    %cst = arith.constant dense<0.000000e+00> : vector<8x64xf32>
    %2 = tpu.matmul %0, %1, %cst {dimension_numbers = #tpu.dot_dimension_numbers<[1], [0], [0], [1], [0, 0, 1, 1], [], []>} : vector<8x48xf32>, vector<48x64xf32>, vector<8x64xf32> -> vector<8x64xf32>
    %c0_3 = arith.constant 0 : index
    %c0_4 = arith.constant 0 : index
    %3 = vector.load %arg3[%c0_3, %c0_4] : memref<1x64xf32, #tpu.memory_space<vmem>>, vector<1x64xf32>
    %4 = vector.broadcast %3 : vector<1x64xf32> to vector<8x64xf32>
    %5 = arith.addf %2, %4 : vector<8x64xf32>
    %cst_5 = arith.constant 0.000000e+00 : f32
    %6 = vector.broadcast %cst_5 : f32 to vector<8x64xf32>
    %7 = arith.maximumf %5, %6 : vector<8x64xf32>
    %c0_6 = arith.constant 0 : index
    %c0_7 = arith.constant 0 : index
    %8 = vector.load %arg4[%c0_6, %c0_7] : memref<64x128xf32, #tpu.memory_space<vmem>>, vector<64x128xf32>
    %cst_8 = arith.constant dense<0.000000e+00> : vector<8x128xf32>
    %9 = tpu.matmul %7, %8, %cst_8 {dimension_numbers = #tpu.dot_dimension_numbers<[1], [0], [0], [1], [0, 0, 1, 1], [], []>} : vector<8x64xf32>, vector<64x128xf32>, vector<8x128xf32> -> vector<8x128xf32>
    %c0_9 = arith.constant 0 : index
    %c0_10 = arith.constant 0 : index
    %10 = vector.load %arg5[%c0_9, %c0_10] : memref<1x128xf32, #tpu.memory_space<vmem>>, vector<1x128xf32>
    %11 = vector.broadcast %10 : vector<1x128xf32> to vector<8x128xf32>
    %12 = arith.addf %9, %11 : vector<8x128xf32>
    %c0_11 = arith.constant 0 : index
    %c0_12 = arith.constant 0 : index
    %13 = vector.load %arg6[%c0_11, %c0_12] : memref<8x128xf32, #tpu.memory_space<vmem>>, vector<8x128xf32>
    tpu.vector_store %arg6[%c0_11, %c0_12], %12 {strides = array<i32>} : memref<8x128xf32, #tpu.memory_space<vmem>>, vector<8x128xf32>,
    return
  }
  func.func @transform_0(%arg0: i32) -> (i32, i32) {
    %c0_i32 = arith.constant 0 : i32
    %c0_i32_0 = arith.constant 0 : i32
    return %arg0, %c0_i32 : i32, i32
  }
  func.func @transform_1(%arg0: i32) -> (i32, i32) {
    %c0_i32 = arith.constant 0 : i32
    %c0_i32_0 = arith.constant 0 : i32
    %c0_i32_1 = arith.constant 0 : i32
    return %c0_i32, %c0_i32_0 : i32, i32
  }
  func.func @transform_2(%arg0: i32) -> (i32, i32) {
    %c0_i32 = arith.constant 0 : i32
    %c0_i32_0 = arith.constant 0 : i32
    %c0_i32_1 = arith.constant 0 : i32
    return %c0_i32, %c0_i32_0 : i32, i32
  }
  func.func @transform_3(%arg0: i32) -> (i32, i32) {
    %c0_i32 = arith.constant 0 : i32
    %c0_i32_0 = arith.constant 0 : i32
    %c0_i32_1 = arith.constant 0 : i32
    return %c0_i32, %c0_i32_0 : i32, i32
  }
  func.func @transform_4(%arg0: i32) -> (i32, i32) {
    %c0_i32 = arith.constant 0 : i32
    %c0_i32_0 = arith.constant 0 : i32
    %c0_i32_1 = arith.constant 0 : i32
    return %c0_i32, %c0_i32_0 : i32, i32
  }
  func.func @transform_5(%arg0: i32) -> (i32, i32) {
    %c0_i32 = arith.constant 0 : i32
    %c0_i32_0 = arith.constant 0 : i32
    return %arg0, %c0_i32 : i32, i32
  }
}

</mosaic_0001>

<llo_original>
// kernel: xmlp_forward.1
$region0: #{xmlp_forward.1}
  #allocation0 [shape = 'u32[]', space=smem, size = 0x4, offset = 0x4, fixed_abs, tag = 'smem constant byte address 0x4 - core index']
  #allocation1 [shape = 'u32[144,128]{1,0:T(1,128)}', space=vmem, size = 0x12000, scoped, tag = 'internal scratch']
  %s0 = inlined_call_operand.hbm [shape: f32[8,48], index: 0, kind: input, shape index: {}]
  %s1 = inlined_call_operand.hbm [shape: f32[48,64], index: 1, kind: input, shape index: {}]
  %s2 = inlined_call_operand.vmem [shape: f32[1,64], index: 2, kind: input, shape index: {}]
  %s3 = inlined_call_operand.hbm [shape: f32[64,128], index: 3, kind: input, shape index: {}]
  %s4 = inlined_call_operand.vmem [shape: f32[1,128], index: 4, kind: input, shape index: {}]
  %s5 = inlined_call_operand.vmem [shape: f32[8,128], index: 5, kind: output, shape index: {}]
  %s6 = sld [smem:[#allocation0]]
  $region42: #{xmlp_forward.1} parent=0
    _
  %s8 = ssub.s32 1, %s6
  %s9 = scalar_select 0, %s8, %s6
  $region1: #{xmlp_forward.1} parent=0
    #allocation2 [shape = 'u8[4096]{0}', space=vmem, size = 0x1000, scoped, tag = 'input window, operand 0, single buffered']
    #allocation3 [shape = 's32[1]{0}', space=sflag, size = 0x4, scoped, tag = 'scoped memory for xmlp_forward.1']
    #allocation4 [shape = 'u8[24576]{0}', space=vmem, size = 0x6000, scoped, tag = 'input window, operand 1, single buffered']
    #allocation5 [shape = 's32[1]{0}', space=sflag, size = 0x4, scoped, tag = 'scoped memory for xmlp_forward.1']
    #allocation6 [shape = 'u8[32768]{0}', space=vmem, size = 0x8000, scoped, tag = 'input window, operand 3, single buffered']
    %10 = vsyncpa [#allocation3], 0
    %11 = vsyncpa [#allocation5], 0
    // Predicated region
    $region2: #{xmlp_forward.1} parent=1 // pred_check
      _
    $region3: #{xmlp_forward.1} parent=1 // pred_check_branch
      %13 = sbr.rel (0) target = $region5
    $region4: #{xmlp_forward.1} parent=1 // pred_region
      %s15 = ssub.s32 128, 128
      %16 = vsyncadd [#allocation3], %s15
      %s18 = sshll.u32 [#allocation2], 4
      %s19 = int_to_ptr.vmem [resolvable:$true] %s18
      %21 = dma.hbm_to_vmem [thread:$0]  %s0, 128, %s19, [#allocation3]
    $region5: #{xmlp_forward.1} parent=1 // pred_fallthru
      _
    // Predicated region
    $region6: #{xmlp_forward.1} parent=1 // pred_check
      _
    $region7: #{xmlp_forward.1} parent=1 // pred_check_branch
      %23 = sbr.rel (0) target = $region9
    $region8: #{xmlp_forward.1} parent=1 // pred_region
      %s25 = ssub.s32 768, 768
      %26 = vsyncadd [#allocation5], %s25
      %s27 = sshll.u32 [#allocation4], 4
      %s28 = int_to_ptr.vmem [resolvable:$true] %s27
      %33 = dma.hbm_to_vmem [thread:$0]  %s1, 768, %s28, [#allocation5], 128, 128, 8
    $region9: #{xmlp_forward.1} parent=1 // pred_fallthru
      _
    // Predicated region
    $region10: #{xmlp_forward.1} parent=1 // pred_check
      _
    $region11: #{xmlp_forward.1} parent=1 // pred_check_branch
      %35 = sbr.rel (0) target = $region13
    $region12: #{xmlp_forward.1} parent=1 // pred_region
      _
    $region13: #{xmlp_forward.1} parent=1 // pred_fallthru
      _
    // Predicated region
    $region14: #{xmlp_forward.1} parent=1 // pred_check
      _
    $region15: #{xmlp_forward.1} parent=1 // pred_check_branch
      %37 = sbr.rel (0) target = $region17
    $region16: #{xmlp_forward.1} parent=1 // pred_region
      %s39 = ssub.s32 1024, 1024
      %40 = vsyncadd [#allocation5], %s39
      %s41 = sshll.u32 [#allocation6], 4
      %s42 = int_to_ptr.vmem [resolvable:$true] %s41
      %47 = dma.hbm_to_vmem [thread:$0]  %s3, 1024, %s42, [#allocation5], 128, 128, 8
    $region17: #{xmlp_forward.1} parent=1 // pred_fallthru
      _
    // Predicated region
    $region18: #{xmlp_forward.1} parent=1 // pred_check
      _
    $region19: #{xmlp_forward.1} parent=1 // pred_check_branch
      %49 = sbr.rel (0) target = $region21
    $region20: #{xmlp_forward.1} parent=1 // pred_region
      _
    $region21: #{xmlp_forward.1} parent=1 // pred_fallthru
      _
    // Predicated region
    $region22: #{xmlp_forward.1} parent=1 // pred_check
      _
    $region23: #{xmlp_forward.1} parent=1 // pred_check_branch
      %51 = sbr.rel (0) target = $region25
    $region24: #{xmlp_forward.1} parent=1 // pred_region
      %52 = dma.done [#allocation3], 128
    $region25: #{xmlp_forward.1} parent=1 // pred_fallthru
      _
    // Predicated region
    $region26: #{xmlp_forward.1} parent=1 // pred_check
      _
    $region27: #{xmlp_forward.1} parent=1 // pred_check_branch
      %54 = sbr.rel (0) target = $region29
    $region28: #{xmlp_forward.1} parent=1 // pred_region
      %55 = dma.done [#allocation5], 768
    $region29: #{xmlp_forward.1} parent=1 // pred_fallthru
      _
    // Predicated region
    $region30: #{xmlp_forward.1} parent=1 // pred_check
      _
    $region31: #{xmlp_forward.1} parent=1 // pred_check_branch
      %57 = sbr.rel (0) target = $region33
    $region32: #{xmlp_forward.1} parent=1 // pred_region
      %58 = dma.done [#allocation5], 1024
    $region33: #{xmlp_forward.1} parent=1 // pred_fallthru
      _
    %v59 = vld [vmem:[#allocation2] sm:$0xff]
    %v60 = vld [vmem:[#allocation4] sm:$0xff]
    %v61 = vld [vmem:[#allocation4 + $0x8] sm:$0xff]
    %v62 = vld [vmem:[#allocation4 + $0x10] sm:$0xff]
    %v63 = vld [vmem:[#allocation4 + $0x18] sm:$0xff]
    %v64 = vld [vmem:[#allocation4 + $0x20] sm:$0xff]
    %v65 = vld [vmem:[#allocation4 + $0x28] sm:$0xff]
    %v66 = vld [vmem:[%s2] sm:$0x1]
    %v68 = vlaneseq
    %v69 = vshrl.u32 %v68, 7
    %v70 = vsub.s32 0, %v69
    %v71 = vrot.slane %v66, %v70
    %vm73 = vcmask 392192
    %v75 = vsel %vm73, %v59, 0
    %77 = vmatprep.subr.mxu0 0.0
    %78 = vmatpush1.msra.mxu0 0.0
    %79 = vmatprep.subr.mxu0 0.0
    %80 = vmatpush1.msra.mxu0 0.0
    %81 = vmatprep.subr.mxu0 0.0
    %82 = vmatpush1.msra.mxu0 0.0
    %83 = vmatprep.subr.mxu0 0.0
    %84 = vmatpush1.msra.mxu0 0.0
    %85 = vmatprep.subr.mxu0 0.0
    %86 = vmatpush1.msra.mxu0 0.0
    %87 = vmatprep.subr.mxu0 0.0
    %88 = vmatpush1.msra.mxu0 0.0
    %89 = vmatprep.subr.mxu0 0.0
    %90 = vmatpush1.msra.mxu0 0.0
    %91 = vmatprep.subr.mxu0 0.0
    %92 = vmatpush1.msra.mxu0 0.0
    %93 = vmatprep.subr.mxu0 0.0
    %94 = vmatpush1.msra.mxu0 0.0
    %95 = vmatprep.subr.mxu0 0.0
    %96 = vmatpush1.msra.mxu0 0.0
    %97 = vmatprep.subr.mxu0 0.0
    %98 = vmatpush1.msra.mxu0 %v65
    %99 = vmatprep.subr.mxu0 0.0
    %100 = vmatpush1.msra.mxu0 %v64
    %101 = vmatprep.subr.mxu0 0.0
    %102 = vmatpush1.msra.mxu0 %v63
    %103 = vmatprep.subr.mxu0 0.0
    %104 = vmatpush1.msra.mxu0 %v62
    %105 = vmatprep.subr.mxu0 0.0
    %106 = vmatpush1.msra.mxu0 %v61
    %107 = vmatprep.subr.mxu0 0.0
    %108 = vmatpush1.msra.mxu0 %v60
    %109 = vmatprep.subr.mxu0 0.0
    %110 = vmatpush2.msra.mxu0 0.0
    %111 = vmatprep.subr.mxu0 0.0
    %112 = vmatpush2.msra.mxu0 0.0
    %113 = vmatprep.subr.mxu0 0.0
    %114 = vmatpush2.msra.mxu0 0.0
    %115 = vmatprep.subr.mxu0 0.0
    %116 = vmatpush2.msra.mxu0 0.0
    %117 = vmatprep.subr.mxu0 0.0
    %118 = vmatpush2.msra.mxu0 0.0
    %119 = vmatprep.subr.mxu0 0.0
    %120 = vmatpush2.msra.mxu0 0.0
    %121 = vmatprep.subr.mxu0 0.0
    %122 = vmatpush2.msra.mxu0 0.0
    %123 = vmatprep.subr.mxu0 0.0
    %124 = vmatpush2.msra.mxu0 0.0
    %125 = vmatprep.subr.mxu0 0.0
    %126 = vmatpush2.msra.mxu0 0.0
    %127 = vmatprep.subr.mxu0 0.0
    %128 = vmatpush2.msra.mxu0 0.0
    %129 = vmatprep.subr.mxu0 0.0
    %130 = vmatpush2.msra.mxu0 0.0
    %131 = vmatprep.subr.mxu0 0.0
    %132 = vmatpush2.msra.mxu0 0.0
    %133 = vmatprep.subr.mxu0 0.0
    %134 = vmatpush2.msra.mxu0 0.0
    %135 = vmatprep.subr.mxu0 0.0
    %136 = vmatpush2.msra.mxu0 0.0
    %137 = vmatprep.subr.mxu0 0.0
    %138 = vmatpush2.msra.mxu0 0.0
    %139 = vmatprep.subr.mxu0 0.0
    %140 = vmatpush2.msra.mxu0 0.0
    %141 = vmatprep.mubr.f32.mxu0 0.0
    %142 = vmatmul.mubr.f32.gmra.mxu0 %v75
    %v143 = vpop.f32.mrf.mxu0
    %v144 = vadd.f32 %v71, %v143
    %v145 = vpop.f32.mrf.mxu0
    %146 = vdwg.mxu0
    %v147 = vmax.f32 %v144, 0.0
    %v148 = vld [vmem:[#allocation6] sm:$0xff]
    %v149 = vld [vmem:[#allocation6 + $0x8] sm:$0xff]
    %v150 = vld [vmem:[#allocation6 + $0x10] sm:$0xff]
    %v151 = vld [vmem:[#allocation6 + $0x18] sm:$0xff]
    %v152 = vld [vmem:[#allocation6 + $0x20] sm:$0xff]
    %v153 = vld [vmem:[#allocation6 + $0x28] sm:$0xff]
    %v154 = vld [vmem:[#allocation6 + $0x30] sm:$0xff]
    %v155 = vld [vmem:[#allocation6 + $0x38] sm:$0xff]
    %v156 = vld [vmem:[%s4] sm:$0x1]
    %v158 = vlaneseq
    %v159 = vshrl.u32 %v158, 7
    %v160 = vsub.s32 0, %v159
    %v161 = vrot.slane %v156, %v160
    %vm163 = vcmask 523264
    %v165 = vsel %vm163, %v147, 0
    %167 = vmatprep.subr.mxu0 0.0
    %168 = vmatpush1.msra.mxu0 0.0
    %169 = vmatprep.subr.mxu0 0.0
    %170 = vmatpush1.msra.mxu0 0.0
    %171 = vmatprep.subr.mxu0 0.0
    %172 = vmatpush1.msra.mxu0 0.0
    %173 = vmatprep.subr.mxu0 0.0
    %174 = vmatpush1.msra.mxu0 0.0
    %175 = vmatprep.subr.mxu0 0.0
    %176 = vmatpush1.msra.mxu0 0.0
    %177 = vmatprep.subr.mxu0 0.0
    %178 = vmatpush1.msra.mxu0 0.0
    %179 = vmatprep.subr.mxu0 0.0
    %180 = vmatpush1.msra.mxu0 0.0
    %181 = vmatprep.subr.mxu0 0.0
    %182 = vmatpush1.msra.mxu0 0.0
    %183 = vmatprep.subr.mxu0 0.0
    %184 = vmatpush1.msra.mxu0 %v155
    %185 = vmatprep.subr.mxu0 0.0
    %186 = vmatpush1.msra.mxu0 %v154
    %187 = vmatprep.subr.mxu0 0.0
    %188 = vmatpush1.msra.mxu0 %v153
    %189 = vmatprep.subr.mxu0 0.0
    %190 = vmatpush1.msra.mxu0 %v152
    %191 = vmatprep.subr.mxu0 0.0
    %192 = vmatpush1.msra.mxu0 %v151
    %193 = vmatprep.subr.mxu0 0.0
    %194 = vmatpush1.msra.mxu0 %v150
    %195 = vmatprep.subr.mxu0 0.0
    %196 = vmatpush1.msra.mxu0 %v149
    %197 = vmatprep.subr.mxu0 0.0
    %198 = vmatpush1.msra.mxu0 %v148
    %199 = vmatprep.subr.mxu0 0.0
    %200 = vmatpush2.msra.mxu0 0.0
    %201 = vmatprep.subr.mxu0 0.0
    %202 = vmatpush2.msra.mxu0 0.0
    %203 = vmatprep.subr.mxu0 0.0
    %204 = vmatpush2.msra.mxu0 0.0
    %205 = vmatprep.subr.mxu0 0.0
    %206 = vmatpush2.msra.mxu0 0.0
    %207 = vmatprep.subr.mxu0 0.0
    %208 = vmatpush2.msra.mxu0 0.0
    %209 = vmatprep.subr.mxu0 0.0
    %210 = vmatpush2.msra.mxu0 0.0
    %211 = vmatprep.subr.mxu0 0.0
    %212 = vmatpush2.msra.mxu0 0.0
    %213 = vmatprep.subr.mxu0 0.0
    %214 = vmatpush2.msra.mxu0 0.0
    %215 = vmatprep.subr.mxu0 0.0
    %216 = vmatpush2.msra.mxu0 0.0
    %217 = vmatprep.subr.mxu0 0.0
    %218 = vmatpush2.msra.mxu0 0.0
    %219 = vmatprep.subr.mxu0 0.0
    %220 = vmatpush2.msra.mxu0 0.0
    %221 = vmatprep.subr.mxu0 0.0
    %222 = vmatpush2.msra.mxu0 0.0
    %223 = vmatprep.subr.mxu0 0.0
    %224 = vmatpush2.msra.mxu0 0.0
    %225 = vmatprep.subr.mxu0 0.0
    %226 = vmatpush2.msra.mxu0 0.0
    %227 = vmatprep.subr.mxu0 0.0
    %228 = vmatpush2.msra.mxu0 0.0
    %229 = vmatprep.subr.mxu0 0.0
    %230 = vmatpush2.msra.mxu0 0.0
    %231 = vmatprep.mubr.f32.mxu0 0.0
    %232 = vmatmul.mubr.f32.gmra.mxu0 %v165
    %v233 = vpop.f32.mrf.mxu0
    %v234 = vadd.f32 %v161, %v233
    %v235 = vpop.f32.mrf.mxu0
    %236 = vdwg.mxu0
    %237 = vst [vmem:[%s5] sm:$0xff] %v234
    // Predicated region
    $region34: #{xmlp_forward.1} parent=1 // pred_check
      _
    $region35: #{xmlp_forward.1} parent=1 // pred_check_branch
      %239 = sbr.rel (0) target = $region37
    $region36: #{xmlp_forward.1} parent=1 // pred_region
      _
    $region37: #{xmlp_forward.1} parent=1 // pred_fallthru
      _
    // Predicated region
    $region38: #{xmlp_forward.1} parent=1 // pred_check
      _
    $region39: #{xmlp_forward.1} parent=1 // pred_check_branch
      %241 = sbr.rel (0) target = $region41
    $region40: #{xmlp_forward.1} parent=1 // pred_region
      _
    $region41: #{xmlp_forward.1} parent=1 // pred_fallthru
      _
    %242 = vsyncpa [#allocation3], 1
    %243 = vsyncpa [#allocation5], 1

</llo_original>
